<compile_context>
chip_gen: v7x
topology: tpu7x:2x2x1
jax: 0.10.0
libtpu: 0.0.40
codegen_flags: <defaults>
</compile_context>

<pallas_src>
import jax
import jax.numpy as jnp
from jax.experimental import pallas as pl
from jax.experimental.pallas import tpu as pltpu

_PARAM_ORDER = ("w1", "b1", "w2", "b2", "w3", "b3",
                "w4", "b4", "w5", "b5", "w6", "b6")


def _round_up(x, m):
    return ((x + m - 1) // m) * m


def _make_kernel(use_bf16):
    mxu_dtype = jnp.bfloat16 if use_bf16 else jnp.float32

    def kernel(x_ref,
               w1, b1, w2, b2, w3, b3,          # encoder params
               w4, b4, w5, b5, w6, b6,          # decoder params
               enc_ref, dec_ref):
        def dense(a, w_ref, b_ref):
            # MXU gets (optionally) bf16 operands; accumulation + bias stay f32.
            return jnp.dot(a.astype(mxu_dtype), w_ref[...].astype(mxu_dtype),
                           preferred_element_type=jnp.float32) + b_ref[...]

        x = x_ref[...]
        # ---- encoder: Linear->ReLU, Linear->ReLU, Linear ----
        h = jnp.maximum(dense(x, w1, b1), 0.0)
        h = jnp.maximum(dense(h, w2, b2), 0.0)
        z = dense(h, w3, b3)
        enc_ref[...] = z.astype(enc_ref.dtype)
        # ---- decoder: Linear->ReLU, Linear->ReLU, Linear->Tanh ----
        d = jnp.maximum(dense(z, w4, b4), 0.0)
        d = jnp.maximum(dense(d, w5, b5), 0.0)
        dec_ref[...] = jnp.tanh(dense(d, w6, b6)).astype(dec_ref.dtype)

    return kernel


def autoencoder_forward(x, params, *, tile_b=1024, use_bf16=True):
    """x: (B, input_size) float32.  params: dict of W (in,out) / b (1,out), float32.

    Returns (enc, dec) matching the PyTorch Autoencoder forward.
    """
    B, input_size = x.shape
    compress_total = params["w3"].shape[1]

    # ---- batch tiling ------------------------------------------------------
    row_align = 16 if use_bf16 else 8      # bf16 vregs pack (16,128); avoid repacking
    min_split_rows = 256                   # don't split tiny batches across 2 TCs
    tile_b = max(row_align, _round_up(int(tile_b), row_align))
    if B <= tile_b:
        if B >= 2 * min_split_rows:
            # >=2 grid steps so v7x's second TensorCore gets work (no-op on v5e/v6e).
            tile_b = _round_up(pl.cdiv(B, 2), row_align)
        else:
            tile_b = min(tile_b, _round_up(B, row_align))
    grid = (pl.cdiv(B, tile_b),)           # ragged last block handled by Pallas

    # ---- block specs (no padding anywhere; full-array blocks for the params) ---
    x_spec = pl.BlockSpec((tile_b, input_size), lambda i: (i, 0))
    in_specs = [x_spec]
    for name in _PARAM_ORDER:
        in_specs.append(pl.BlockSpec(params[name].shape, lambda i: (0, 0)))

    out_specs = [
        pl.BlockSpec((tile_b, compress_total), lambda i: (i, 0)),
        pl.BlockSpec((tile_b, input_size), lambda i: (i, 0)),
    ]
    out_shape = (
        jax.ShapeDtypeStruct((B, compress_total), jnp.float32),
        jax.ShapeDtypeStruct((B, input_size), jnp.float32),
    )

    # ---- scheduling hints ----------------------------------------------------
    layer_dims = [(input_size, 128), (128, 64), (64, compress_total),
                  (compress_total, 64), (64, 128), (128, input_size)]
    param_count = int(sum(int(params[n].size) for n in _PARAM_ORDER))
    cost = pl.CostEstimate(
        flops=2 * B * sum(a * b for a, b in layer_dims),
        transcendentals=B * input_size,                       # tanh on the EUP
        bytes_accessed=4 * (2 * B * input_size + B * compress_total + param_count),
    )

    # ---- VMEM budget: only raise the scoped limit if really needed, capped to HW ----
    param_bytes = 4 * param_count
    est_vmem = (2 * tile_b * input_size * 4                     # double-buffered x tile
                + 2 * param_bytes                               # double-buffered params
                + 2 * tile_b * (compress_total + input_size) * 4  # double-buffered outputs
                + 10 * tile_b * max(input_size, 128) * 4)       # live f32/bf16 intermediates
    compiler_kwargs = dict(dimension_semantics=("parallel",))
    if est_vmem > (16 << 20):
        try:
            cap = int(pltpu.get_tpu_info().vmem_capacity_bytes)
        except Exception:
            cap = 64 << 20                                      # v7x worst case
        compiler_kwargs["vmem_limit_bytes"] = int(
            min(est_vmem * 3 // 2, cap - (8 << 20)))            # keep pipelining headroom

    fn = pl.pallas_call(
        _make_kernel(use_bf16),
        out_shape=out_shape,
        grid_spec=pltpu.PrefetchScalarGridSpec(
            num_scalar_prefetch=0,
            grid=grid,
            in_specs=in_specs,
            out_specs=out_specs,
        ),
        compiler_params=pltpu.CompilerParams(**compiler_kwargs),
        cost_estimate=cost,
    )
    enc, dec = fn(x, *[params[n] for n in _PARAM_ORDER])
    return enc, dec


def init_params(key, input_size, compress_total):
    """Deterministic init mirroring PyTorch Linear's U(-1/sqrt(fan_in), +...)."""
    dims = [
        (input_size, 128), (128, 64), (64, compress_total),      # encoder
        (compress_total, 64), (64, 128), (128, input_size),      # decoder
    ]
    params = {}
    for idx, (fan_in, fan_out) in enumerate(dims, start=1):
        key, kw, kb = jax.random.split(key, 3)
        bound = 1.0 / jnp.sqrt(fan_in)
        # stored as (in, out); biases kept 2-D (1, out) for clean lane layout
        params[f"w{idx}"] = jax.random.uniform(
            kw, (fan_in, fan_out), jnp.float32, -bound, bound)
        params[f"b{idx}"] = jax.random.uniform(
            kb, (1, fan_out), jnp.float32, -bound, bound)
    return params


def reference_forward(x, params):
    h = jnp.maximum(x @ params["w1"] + params["b1"], 0.0)
    h = jnp.maximum(h @ params["w2"] + params["b2"], 0.0)
    z = h @ params["w3"] + params["b3"]
    d = jnp.maximum(z @ params["w4"] + params["b4"], 0.0)
    d = jnp.maximum(d @ params["w5"] + params["b5"], 0.0)
    out = jnp.tanh(d @ params["w6"] + params["b6"])
    return z, out


if __name__ == "__main__":
    INPUT_SIZE = 128        # e.g. flattened image patch
    COMPRESS_TOTAL = 32
    BATCH = 20              # deliberately not 8/16-aligned: exercises the ragged last block

    key = jax.random.PRNGKey(0)
    key, kx = jax.random.split(key)
    x = jax.random.normal(kx, (BATCH, INPUT_SIZE), jnp.float32)
    params = init_params(key, INPUT_SIZE, COMPRESS_TOTAL)

    enc_ref, dec_ref = reference_forward(x, params)

    # Default fast path: bf16 MXU operands, f32 accumulation / activations.
    enc, dec = jax.block_until_ready(autoencoder_forward(x, params))
    assert enc.shape == (BATCH, COMPRESS_TOTAL)
    assert dec.shape == (BATCH, INPUT_SIZE)
    assert jnp.allclose(enc, enc_ref, atol=5e-2, rtol=5e-2)
    assert jnp.allclose(dec, dec_ref, atol=5e-2, rtol=5e-2)

    # Exact f32 path.
    enc32, dec32 = jax.block_until_ready(
        autoencoder_forward(x, params, use_bf16=False))
    assert jnp.allclose(enc32, enc_ref, atol=1e-4, rtol=1e-4)
    assert jnp.allclose(dec32, dec_ref, atol=1e-4, rtol=1e-4)

    # Multi-step grid with a ragged last block (grid=(3,), 300 = 2*128 + 44).
    B2 = 300
    key, kx2 = jax.random.split(key)
    x2 = jax.random.normal(kx2, (B2, INPUT_SIZE), jnp.float32)
    enc2, dec2 = jax.block_until_ready(
        autoencoder_forward(x2, params, tile_b=128, use_bf16=False))
    enc2_ref, dec2_ref = reference_forward(x2, params)
    assert jnp.allclose(enc2, enc2_ref, atol=1e-4, rtol=1e-4)
    assert jnp.allclose(dec2, dec2_ref, atol=1e-4, rtol=1e-4)

    print("KERNEL_OK")
</pallas_src>

<mosaic_0001>
module attributes {stable_mosaic.version = 11 : i64} {
  func.func @kernel(%arg0: i32, %arg1: memref<32x128xf32, #tpu.memory_space<vmem>>, %arg2: memref<128x128xf32, #tpu.memory_space<vmem>>, %arg3: memref<1x128xf32, #tpu.memory_space<vmem>>, %arg4: memref<128x64xf32, #tpu.memory_space<vmem>>, %arg5: memref<1x64xf32, #tpu.memory_space<vmem>>, %arg6: memref<64x32xf32, #tpu.memory_space<vmem>>, %arg7: memref<1x32xf32, #tpu.memory_space<vmem>>, %arg8: memref<32x64xf32, #tpu.memory_space<vmem>>, %arg9: memref<1x64xf32, #tpu.memory_space<vmem>>, %arg10: memref<64x128xf32, #tpu.memory_space<vmem>>, %arg11: memref<1x128xf32, #tpu.memory_space<vmem>>, %arg12: memref<128x128xf32, #tpu.memory_space<vmem>>, %arg13: memref<1x128xf32, #tpu.memory_space<vmem>>, %arg14: memref<32x32xf32, #tpu.memory_space<vmem>>, %arg15: memref<32x128xf32, #tpu.memory_space<vmem>>) attributes {dimension_semantics = [#tpu.dimension_semantics<parallel>], iteration_bounds = array<i64: 1>, scalar_prefetch = 0 : i64, scratch_operands = 0 : i64, tpu.core_type = #tpu.core_type<tc>, window_params = [{transform_indices = @transform_0, window_bounds = array<i64: 32, 128>}, {pipeline_mode = #tpu.pipeline_mode<synchronous>, transform_indices = @transform_1, window_bounds = array<i64: 128, 128>}, {pipeline_mode = #tpu.pipeline_mode<synchronous>, transform_indices = @transform_2, window_bounds = array<i64: 1, 128>}, {pipeline_mode = #tpu.pipeline_mode<synchronous>, transform_indices = @transform_3, window_bounds = array<i64: 128, 64>}, {pipeline_mode = #tpu.pipeline_mode<synchronous>, transform_indices = @transform_4, window_bounds = array<i64: 1, 64>}, {pipeline_mode = #tpu.pipeline_mode<synchronous>, transform_indices = @transform_5, window_bounds = array<i64: 64, 32>}, {pipeline_mode = #tpu.pipeline_mode<synchronous>, transform_indices = @transform_6, window_bounds = array<i64: 1, 32>}, {pipeline_mode = #tpu.pipeline_mode<synchronous>, transform_indices = @transform_7, window_bounds = array<i64: 32, 64>}, {pipeline_mode = #tpu.pipeline_mode<synchronous>, transform_indices = @transform_8, window_bounds = array<i64: 1, 64>}, {pipeline_mode = #tpu.pipeline_mode<synchronous>, transform_indices = @transform_9, window_bounds = array<i64: 64, 128>}, {pipeline_mode = #tpu.pipeline_mode<synchronous>, transform_indices = @transform_10, window_bounds = array<i64: 1, 128>}, {pipeline_mode = #tpu.pipeline_mode<synchronous>, transform_indices = @transform_11, window_bounds = array<i64: 128, 128>}, {pipeline_mode = #tpu.pipeline_mode<synchronous>, transform_indices = @transform_12, window_bounds = array<i64: 1, 128>}, {transform_indices = @transform_13, window_bounds = array<i64: 32, 32>}, {transform_indices = @transform_14, window_bounds = array<i64: 32, 128>}]} {
    %c0 = arith.constant 0 : index
    %c0_0 = arith.constant 0 : index
    %0 = vector.load %arg1[%c0, %c0_0] : memref<32x128xf32, #tpu.memory_space<vmem>>, vector<32x128xf32>
    %1 = arith.truncf %0 : vector<32x128xf32> to vector<32x128xbf16>
    %c0_1 = arith.constant 0 : index
    %c0_2 = arith.constant 0 : index
    %2 = vector.load %arg2[%c0_1, %c0_2] : memref<128x128xf32, #tpu.memory_space<vmem>>, vector<128x128xf32>
    %3 = arith.truncf %2 : vector<128x128xf32> to vector<128x128xbf16>
    %cst = arith.constant dense<0.000000e+00> : vector<32x128xf32>
    %4 = tpu.matmul %1, %3, %cst {dimension_numbers = #tpu.dot_dimension_numbers<[1], [0], [0], [1], [0, 0, 1, 1], [], []>} : vector<32x128xbf16>, vector<128x128xbf16>, vector<32x128xf32> -> vector<32x128xf32>
    %c0_3 = arith.constant 0 : index
    %c0_4 = arith.constant 0 : index
    %5 = vector.load %arg3[%c0_3, %c0_4] : memref<1x128xf32, #tpu.memory_space<vmem>>, vector<1x128xf32>
    %6 = vector.broadcast %5 : vector<1x128xf32> to vector<32x128xf32>
    %7 = arith.addf %4, %6 : vector<32x128xf32>
    %cst_5 = arith.constant 0.000000e+00 : f32
    %8 = vector.broadcast %cst_5 : f32 to vector<32x128xf32>
    %9 = arith.maximumf %7, %8 : vector<32x128xf32>
    %10 = arith.truncf %9 : vector<32x128xf32> to vector<32x128xbf16>
    %c0_6 = arith.constant 0 : index
    %c0_7 = arith.constant 0 : index
    %11 = vector.load %arg4[%c0_6, %c0_7] : memref<128x64xf32, #tpu.memory_space<vmem>>, vector<128x64xf32>
    %12 = arith.truncf %11 : vector<128x64xf32> to vector<128x64xbf16>
    %cst_8 = arith.constant dense<0.000000e+00> : vector<32x64xf32>
    %13 = tpu.matmul %10, %12, %cst_8 {dimension_numbers = #tpu.dot_dimension_numbers<[1], [0], [0], [1], [0, 0, 1, 1], [], []>} : vector<32x128xbf16>, vector<128x64xbf16>, vector<32x64xf32> -> vector<32x64xf32>
    %c0_9 = arith.constant 0 : index
    %c0_10 = arith.constant 0 : index
    %14 = vector.load %arg5[%c0_9, %c0_10] : memref<1x64xf32, #tpu.memory_space<vmem>>, vector<1x64xf32>
    %15 = vector.broadcast %14 : vector<1x64xf32> to vector<32x64xf32>
    %16 = arith.addf %13, %15 : vector<32x64xf32>
    %cst_11 = arith.constant 0.000000e+00 : f32
    %17 = vector.broadcast %cst_11 : f32 to vector<32x64xf32>
    %18 = arith.maximumf %16, %17 : vector<32x64xf32>
    %19 = arith.truncf %18 : vector<32x64xf32> to vector<32x64xbf16>
    %c0_12 = arith.constant 0 : index
    %c0_13 = arith.constant 0 : index
    %20 = vector.load %arg6[%c0_12, %c0_13] : memref<64x32xf32, #tpu.memory_space<vmem>>, vector<64x32xf32>
    %21 = arith.truncf %20 : vector<64x32xf32> to vector<64x32xbf16>
    %cst_14 = arith.constant dense<0.000000e+00> : vector<32x32xf32>
    %22 = tpu.matmul %19, %21, %cst_14 {dimension_numbers = #tpu.dot_dimension_numbers<[1], [0], [0], [1], [0, 0, 1, 1], [], []>} : vector<32x64xbf16>, vector<64x32xbf16>, vector<32x32xf32> -> vector<32x32xf32>
    %c0_15 = arith.constant 0 : index
    %c0_16 = arith.constant 0 : index
    %23 = vector.load %arg7[%c0_15, %c0_16] : memref<1x32xf32, #tpu.memory_space<vmem>>, vector<1x32xf32>
    %24 = vector.broadcast %23 : vector<1x32xf32> to vector<32x32xf32>
    %25 = arith.addf %22, %24 : vector<32x32xf32>
    %c0_17 = arith.constant 0 : index
    %c0_18 = arith.constant 0 : index
    %26 = vector.load %arg14[%c0_17, %c0_18] : memref<32x32xf32, #tpu.memory_space<vmem>>, vector<32x32xf32>
    tpu.vector_store %arg14[%c0_17, %c0_18], %25 {strides = array<i32>} : memref<32x32xf32, #tpu.memory_space<vmem>>, vector<32x32xf32>,
    %27 = arith.truncf %25 : vector<32x32xf32> to vector<32x32xbf16>
    %c0_19 = arith.constant 0 : index
    %c0_20 = arith.constant 0 : index
    %28 = vector.load %arg8[%c0_19, %c0_20] : memref<32x64xf32, #tpu.memory_space<vmem>>, vector<32x64xf32>
    %29 = arith.truncf %28 : vector<32x64xf32> to vector<32x64xbf16>
    %cst_21 = arith.constant dense<0.000000e+00> : vector<32x64xf32>
    %30 = tpu.matmul %27, %29, %cst_21 {dimension_numbers = #tpu.dot_dimension_numbers<[1], [0], [0], [1], [0, 0, 1, 1], [], []>} : vector<32x32xbf16>, vector<32x64xbf16>, vector<32x64xf32> -> vector<32x64xf32>
    %c0_22 = arith.constant 0 : index
    %c0_23 = arith.constant 0 : index
    %31 = vector.load %arg9[%c0_22, %c0_23] : memref<1x64xf32, #tpu.memory_space<vmem>>, vector<1x64xf32>
    %32 = vector.broadcast %31 : vector<1x64xf32> to vector<32x64xf32>
    %33 = arith.addf %30, %32 : vector<32x64xf32>
    %cst_24 = arith.constant 0.000000e+00 : f32
    %34 = vector.broadcast %cst_24 : f32 to vector<32x64xf32>
    %35 = arith.maximumf %33, %34 : vector<32x64xf32>
    %36 = arith.truncf %35 : vector<32x64xf32> to vector<32x64xbf16>
    %c0_25 = arith.constant 0 : index
    %c0_26 = arith.constant 0 : index
    %37 = vector.load %arg10[%c0_25, %c0_26] : memref<64x128xf32, #tpu.memory_space<vmem>>, vector<64x128xf32>
    %38 = arith.truncf %37 : vector<64x128xf32> to vector<64x128xbf16>
    %cst_27 = arith.constant dense<0.000000e+00> : vector<32x128xf32>
    %39 = tpu.matmul %36, %38, %cst_27 {dimension_numbers = #tpu.dot_dimension_numbers<[1], [0], [0], [1], [0, 0, 1, 1], [], []>} : vector<32x64xbf16>, vector<64x128xbf16>, vector<32x128xf32> -> vector<32x128xf32>
    %c0_28 = arith.constant 0 : index
    %c0_29 = arith.constant 0 : index
    %40 = vector.load %arg11[%c0_28, %c0_29] : memref<1x128xf32, #tpu.memory_space<vmem>>, vector<1x128xf32>
    %41 = vector.broadcast %40 : vector<1x128xf32> to vector<32x128xf32>
    %42 = arith.addf %39, %41 : vector<32x128xf32>
    %cst_30 = arith.constant 0.000000e+00 : f32
    %43 = vector.broadcast %cst_30 : f32 to vector<32x128xf32>
    %44 = arith.maximumf %42, %43 : vector<32x128xf32>
    %45 = arith.truncf %44 : vector<32x128xf32> to vector<32x128xbf16>
    %c0_31 = arith.constant 0 : index
    %c0_32 = arith.constant 0 : index
    %46 = vector.load %arg12[%c0_31, %c0_32] : memref<128x128xf32, #tpu.memory_space<vmem>>, vector<128x128xf32>
    %47 = arith.truncf %46 : vector<128x128xf32> to vector<128x128xbf16>
    %cst_33 = arith.constant dense<0.000000e+00> : vector<32x128xf32>
    %48 = tpu.matmul %45, %47, %cst_33 {dimension_numbers = #tpu.dot_dimension_numbers<[1], [0], [0], [1], [0, 0, 1, 1], [], []>} : vector<32x128xbf16>, vector<128x128xbf16>, vector<32x128xf32> -> vector<32x128xf32>
    %c0_34 = arith.constant 0 : index
    %c0_35 = arith.constant 0 : index
    %49 = vector.load %arg13[%c0_34, %c0_35] : memref<1x128xf32, #tpu.memory_space<vmem>>, vector<1x128xf32>
    %50 = vector.broadcast %49 : vector<1x128xf32> to vector<32x128xf32>
    %51 = arith.addf %48, %50 : vector<32x128xf32>
    %52 = math.tanh %51 : vector<32x128xf32>
    %c0_36 = arith.constant 0 : index
    %c0_37 = arith.constant 0 : index
    %53 = vector.load %arg15[%c0_36, %c0_37] : memref<32x128xf32, #tpu.memory_space<vmem>>, vector<32x128xf32>
    tpu.vector_store %arg15[%c0_36, %c0_37], %52 {strides = array<i32>} : memref<32x128xf32, #tpu.memory_space<vmem>>, vector<32x128xf32>,
    return
  }
  func.func @transform_0(%arg0: i32) -> (i32, i32) {
    %c0_i32 = arith.constant 0 : i32
    %c0_i32_0 = arith.constant 0 : i32
    return %arg0, %c0_i32 : i32, i32
  }
  func.func @transform_1(%arg0: i32) -> (i32, i32) {
    %c0_i32 = arith.constant 0 : i32
    %c0_i32_0 = arith.constant 0 : i32
    %c0_i32_1 = arith.constant 0 : i32
    return %c0_i32, %c0_i32_0 : i32, i32
  }
  func.func @transform_2(%arg0: i32) -> (i32, i32) {
    %c0_i32 = arith.constant 0 : i32
    %c0_i32_0 = arith.constant 0 : i32
    %c0_i32_1 = arith.constant 0 : i32
    return %c0_i32, %c0_i32_0 : i32, i32
  }
  func.func @transform_3(%arg0: i32) -> (i32, i32) {
    %c0_i32 = arith.constant 0 : i32
    %c0_i32_0 = arith.constant 0 : i32
    %c0_i32_1 = arith.constant 0 : i32
    return %c0_i32, %c0_i32_0 : i32, i32
  }
  func.func @transform_4(%arg0: i32) -> (i32, i32) {
    %c0_i32 = arith.constant 0 : i32
    %c0_i32_0 = arith.constant 0 : i32
    %c0_i32_1 = arith.constant 0 : i32
    return %c0_i32, %c0_i32_0 : i32, i32
  }
  func.func @transform_5(%arg0: i32) -> (i32, i32) {
    %c0_i32 = arith.constant 0 : i32
    %c0_i32_0 = arith.constant 0 : i32
    %c0_i32_1 = arith.constant 0 : i32
    return %c0_i32, %c0_i32_0 : i32, i32
  }
  func.func @transform_6(%arg0: i32) -> (i32, i32) {
    %c0_i32 = arith.constant 0 : i32
    %c0_i32_0 = arith.constant 0 : i32
    %c0_i32_1 = arith.constant 0 : i32
    return %c0_i32, %c0_i32_0 : i32, i32
  }
  func.func @transform_7(%arg0: i32) -> (i32, i32) {
    %c0_i32 = arith.constant 0 : i32
    %c0_i32_0 = arith.constant 0 : i32
    %c0_i32_1 = arith.constant 0 : i32
    return %c0_i32, %c0_i32_0 : i32, i32
  }
  func.func @transform_8(%arg0: i32) -> (i32, i32) {
    %c0_i32 = arith.constant 0 : i32
    %c0_i32_0 = arith.constant 0 : i32
    %c0_i32_1 = arith.constant 0 : i32
    return %c0_i32, %c0_i32_0 : i32, i32
  }
  func.func @transform_9(%arg0: i32) -> (i32, i32) {
    %c0_i32 = arith.constant 0 : i32
    %c0_i32_0 = arith.constant 0 : i32
    %c0_i32_1 = arith.constant 0 : i32
    return %c0_i32, %c0_i32_0 : i32, i32
  }
  func.func @transform_10(%arg0: i32) -> (i32, i32) {
    %c0_i32 = arith.constant 0 : i32
    %c0_i32_0 = arith.constant 0 : i32
    %c0_i32_1 = arith.constant 0 : i32
    return %c0_i32, %c0_i32_0 : i32, i32
  }
  func.func @transform_11(%arg0: i32) -> (i32, i32) {
    %c0_i32 = arith.constant 0 : i32
    %c0_i32_0 = arith.constant 0 : i32
    %c0_i32_1 = arith.constant 0 : i32
    return %c0_i32, %c0_i32_0 : i32, i32
  }
  func.func @transform_12(%arg0: i32) -> (i32, i32) {
    %c0_i32 = arith.constant 0 : i32
    %c0_i32_0 = arith.constant 0 : i32
    %c0_i32_1 = arith.constant 0 : i32
    return %c0_i32, %c0_i32_0 : i32, i32
  }
  func.func @transform_13(%arg0: i32) -> (i32, i32) {
    %c0_i32 = arith.constant 0 : i32
    %c0_i32_0 = arith.constant 0 : i32
    return %arg0, %c0_i32 : i32, i32
  }
  func.func @transform_14(%arg0: i32) -> (i32, i32) {
    %c0_i32 = arith.constant 0 : i32
    %c0_i32_0 = arith.constant 0 : i32
    return %arg0, %c0_i32 : i32, i32
  }
}

</mosaic_0001>

<llo_original>
// kernel: tpu_custom_call.1
$region0: #{tpu_custom_call.1}
  #allocation0 [shape = 'u32[]', space=smem, size = 0x4, offset = 0x4, fixed_abs, tag = 'smem constant byte address 0x4 - core index']
  #allocation1 [shape = 'u32[144,128]{1,0:T(1,128)}', space=vmem, size = 0x12000, scoped, tag = 'internal scratch']
  %s0 = inlined_call_operand.hbm [shape: f32[20,128], index: 0, kind: input, shape index: {}]
  %s1 = inlined_call_operand.vmem [shape: f32[128,128], index: 1, kind: input, shape index: {}]
  %s2 = inlined_call_operand.vmem [shape: f32[1,128], index: 2, kind: input, shape index: {}]
  %s3 = inlined_call_operand.vmem [shape: f32[128,64], index: 3, kind: input, shape index: {}]
  %s4 = inlined_call_operand.vmem [shape: f32[1,64], index: 4, kind: input, shape index: {}]
  %s5 = inlined_call_operand.vmem [shape: f32[64,32], index: 5, kind: input, shape index: {}]
  %s6 = inlined_call_operand.hbm [shape: f32[1,32], index: 6, kind: input, shape index: {}]
  %s7 = inlined_call_operand.hbm [shape: f32[32,64], index: 7, kind: input, shape index: {}]
  %s8 = inlined_call_operand.hbm [shape: f32[1,64], index: 8, kind: input, shape index: {}]
  %s9 = inlined_call_operand.vmem [shape: f32[64,128], index: 9, kind: input, shape index: {}]
  %s10 = inlined_call_operand.vmem [shape: f32[1,128], index: 10, kind: input, shape index: {}]
  %s11 = inlined_call_operand.vmem [shape: f32[128,128], index: 11, kind: input, shape index: {}]
  %s12 = inlined_call_operand.vmem [shape: f32[1,128], index: 12, kind: input, shape index: {}]
  %s13 = inlined_call_operand.hbm [shape: f32[20,32], index: 13, kind: output, shape index: {0}]
  %s14 = inlined_call_operand.hbm [shape: f32[20,128], index: 14, kind: output, shape index: {1}]
  %15 = xla_tuple %s13, %s14
  %s16 = sld [smem:[#allocation0]]
  $region86: #{tpu_custom_call.1} parent=0
    _
  %s18 = ssub.s32 1, %s16
  %s19 = scalar_select 0, %s18, %s16
  $region1: #{tpu_custom_call.1} parent=0
    #allocation2 [shape = 'u8[16384]{0}', space=vmem, size = 0x4000, scoped, tag = 'input window, operand 0, single buffered']
    #allocation3 [shape = 's32[1]{0}', space=sflag, size = 0x4, scoped, tag = 'scoped memory for tpu_custom_call.1']
    #allocation4 [shape = 's32[1]{0}', space=sflag, size = 0x4, scoped, tag = 'scoped memory for tpu_custom_call.1']
    #allocation5 [shape = 'u8[512]{0}', space=vmem, size = 0x400, scoped, tag = 'input window, operand 6, single buffered']
    #allocation6 [shape = 's32[1]{0}', space=sflag, size = 0x4, scoped, tag = 'scoped memory for tpu_custom_call.1']
    #allocation7 [shape = 'u8[16384]{0}', space=vmem, size = 0x4000, scoped, tag = 'input window, operand 7, single buffered']
    #allocation8 [shape = 'u8[512]{0}', space=vmem, size = 0x400, scoped, tag = 'input window, operand 8, single buffered']
    #allocation9 [shape = 's32[1]{0}', space=sflag, size = 0x4, scoped, tag = 'scoped memory for tpu_custom_call.1']
    #allocation10 [shape = 'u8[16384]{0}', space=vmem, size = 0x4000, scoped, tag = 'output window, operand 0, single buffered']
    #allocation11 [shape = 'u8[16384]{0}', space=vmem, size = 0x4000, scoped, tag = 'output window, operand 1, single buffered']
    #allocation12 [shape = 's32[1]{0}', space=sflag, size = 0x4, scoped, tag = 'scoped memory for tpu_custom_call.1']
    %20 = vsyncpa [#allocation3], 0
    %21 = vsyncpa [#allocation6], 0
    %22 = vsyncpa [#allocation9], 0
    %23 = vsyncpa [#allocation4], 0
    %24 = vsyncpa [#allocation12], 0
    // Predicated region
    $region2: #{tpu_custom_call.1} parent=1 // pred_check
      _
    $region3: #{tpu_custom_call.1} parent=1 // pred_check_branch
      %26 = sbr.rel (0) target = $region5
    $region4: #{tpu_custom_call.1} parent=1 // pred_region
      %s28 = ssub.s32 512, 384
      %29 = vsyncadd [#allocation3], %s28
      %s30 = sshll.u32 [#allocation2], 4
      %s31 = int_to_ptr.vmem [resolvable:$true] %s30
      %36 = dma.hbm_to_vmem [thread:$0]  %s0, 384, %s31, [#allocation3], 128, 128, 8
    $region5: #{tpu_custom_call.1} parent=1 // pred_fallthru
      _
    // Predicated region
    $region6: #{tpu_custom_call.1} parent=1 // pred_check
      _
    $region7: #{tpu_custom_call.1} parent=1 // pred_check_branch
      %38 = sbr.rel (0) target = $region9
    $region8: #{tpu_custom_call.1} parent=1 // pred_region
      _
    $region9: #{tpu_custom_call.1} parent=1 // pred_fallthru
      _
    // Predicated region
    $region10: #{tpu_custom_call.1} parent=1 // pred_check
      _
    $region11: #{tpu_custom_call.1} parent=1 // pred_check_branch
      %40 = sbr.rel (0) target = $region13
    $region12: #{tpu_custom_call.1} parent=1 // pred_region
      _
    $region13: #{tpu_custom_call.1} parent=1 // pred_fallthru
      _
    // Predicated region
    $region14: #{tpu_custom_call.1} parent=1 // pred_check
      _
    $region15: #{tpu_custom_call.1} parent=1 // pred_check_branch
      %42 = sbr.rel (0) target = $region17
    $region16: #{tpu_custom_call.1} parent=1 // pred_region
      _
    $region17: #{tpu_custom_call.1} parent=1 // pred_fallthru
      _
    // Predicated region
    $region18: #{tpu_custom_call.1} parent=1 // pred_check
      _
    $region19: #{tpu_custom_call.1} parent=1 // pred_check_branch
      %44 = sbr.rel (0) target = $region21
    $region20: #{tpu_custom_call.1} parent=1 // pred_region
      _
    $region21: #{tpu_custom_call.1} parent=1 // pred_fallthru
      _
    // Predicated region
    $region22: #{tpu_custom_call.1} parent=1 // pred_check
      _
    $region23: #{tpu_custom_call.1} parent=1 // pred_check_branch
      %46 = sbr.rel (0) target = $region25
    $region24: #{tpu_custom_call.1} parent=1 // pred_region
      _
    $region25: #{tpu_custom_call.1} parent=1 // pred_fallthru
      _
    // Predicated region
    $region26: #{tpu_custom_call.1} parent=1 // pred_check
      _
    $region27: #{tpu_custom_call.1} parent=1 // pred_check_branch
      %48 = sbr.rel (0) target = $region29
    $region28: #{tpu_custom_call.1} parent=1 // pred_region
      %s50 = ssub.s32 16, 16
      %51 = vsyncadd [#allocation6], %s50
      %s53 = sshll.u32 [#allocation5], 4
      %s54 = int_to_ptr.vmem [resolvable:$true] %s53
      %56 = dma.hbm_to_vmem [thread:$0]  %s6, 16, %s54, [#allocation6]
    $region29: #{tpu_custom_call.1} parent=1 // pred_fallthru
      _
    // Predicated region
    $region30: #{tpu_custom_call.1} parent=1 // pred_check
      _
    $region31: #{tpu_custom_call.1} parent=1 // pred_check_branch
      %58 = sbr.rel (0) target = $region33
    $region32: #{tpu_custom_call.1} parent=1 // pred_region
      %s60 = ssub.s32 512, 512
      %61 = vsyncadd [#allocation6], %s60
      %s62 = sshll.u32 [#allocation7], 4
      %s63 = int_to_ptr.vmem [resolvable:$true] %s62
      %68 = dma.hbm_to_vmem [thread:$0]  %s7, 512, %s63, [#allocation6], 128, 128, 8
    $region33: #{tpu_custom_call.1} parent=1 // pred_fallthru
      _
    // Predicated region
    $region34: #{tpu_custom_call.1} parent=1 // pred_check
      _
    $region35: #{tpu_custom_call.1} parent=1 // pred_check_branch
      %70 = sbr.rel (0) target = $region37
    $region36: #{tpu_custom_call.1} parent=1 // pred_region
      %s72 = ssub.s32 16, 16
      %73 = vsyncadd [#allocation9], %s72
      %s75 = sshll.u32 [#allocation8], 4
      %s76 = int_to_ptr.vmem [resolvable:$true] %s75
      %78 = dma.hbm_to_vmem [thread:$0]  %s8, 16, %s76, [#allocation9]
    $region37: #{tpu_custom_call.1} parent=1 // pred_fallthru
      _
    // Predicated region
    $region38: #{tpu_custom_call.1} parent=1 // pred_check
      _
    $region39: #{tpu_custom_call.1} parent=1 // pred_check_branch
      %80 = sbr.rel (0) target = $region41
    $region40: #{tpu_custom_call.1} parent=1 // pred_region
      _
    $region41: #{tpu_custom_call.1} parent=1 // pred_fallthru
      _
    // Predicated region
    $region42: #{tpu_custom_call.1} parent=1 // pred_check
      _
    $region43: #{tpu_custom_call.1} parent=1 // pred_check_branch
      %82 = sbr.rel (0) target = $region45
    $region44: #{tpu_custom_call.1} parent=1 // pred_region
      _
    $region45: #{tpu_custom_call.1} parent=1 // pred_fallthru
      _
    // Predicated region
    $region46: #{tpu_custom_call.1} parent=1 // pred_check
      _
    $region47: #{tpu_custom_call.1} parent=1 // pred_check_branch
      %84 = sbr.rel (0) target = $region49
    $region48: #{tpu_custom_call.1} parent=1 // pred_region
      _
    $region49: #{tpu_custom_call.1} parent=1 // pred_fallthru
      _
    // Predicated region
    $region50: #{tpu_custom_call.1} parent=1 // pred_check
      _
    $region51: #{tpu_custom_call.1} parent=1 // pred_check_branch
      %86 = sbr.rel (0) target = $region53
    $region52: #{tpu_custom_call.1} parent=1 // pred_region
      _
    $region53: #{tpu_custom_call.1} parent=1 // pred_fallthru
      _
    // Predicated region
    $region54: #{tpu_custom_call.1} parent=1 // pred_check
      _
    $region55: #{tpu_custom_call.1} parent=1 // pred_check_branch
      %88 = sbr.rel (0) target = $region57
    $region56: #{tpu_custom_call.1} parent=1 // pred_region
      %89 = dma.done [#allocation3], 512
    $region57: #{tpu_custom_call.1} parent=1 // pred_fallthru
      _
    // Predicated region
    $region58: #{tpu_custom_call.1} parent=1 // pred_check
      _
    $region59: #{tpu_custom_call.1} parent=1 // pred_check_branch
      %91 = sbr.rel (0) target = $region61
    $region60: #{tpu_custom_call.1} parent=1 // pred_region
      %92 = dma.done [#allocation6], 16
    $region61: #{tpu_custom_call.1} parent=1 // pred_fallthru
      _
    // Predicated region
    $region62: #{tpu_custom_call.1} parent=1 // pred_check
      _
    $region63: #{tpu_custom_call.1} parent=1 // pred_check_branch
      %94 = sbr.rel (0) target = $region65
    $region64: #{tpu_custom_call.1} parent=1 // pred_region
      %95 = dma.done [#allocation6], 512
    $region65: #{tpu_custom_call.1} parent=1 // pred_fallthru
      _
    // Predicated region
    $region66: #{tpu_custom_call.1} parent=1 // pred_check
      _
    $region67: #{tpu_custom_call.1} parent=1 // pred_check_branch
      %97 = sbr.rel (0) target = $region69
    $region68: #{tpu_custom_call.1} parent=1 // pred_region
      %98 = dma.done [#allocation9], 16
    $region69: #{tpu_custom_call.1} parent=1 // pred_fallthru
      _
    %v100 = vld [vmem:[#allocation2] sm:$0xff]
    %v101 = vld [vmem:[#allocation2 + $0x8] sm:$0xff]
    %v102 = vld [vmem:[#allocation2 + $0x10] sm:$0xff]
    %v103 = vld [vmem:[#allocation2 + $0x18] sm:$0xff]
    %v104 = vpack.c.bf16 %v101, %v100
    %v105 = vpack.c.bf16 %v103, %v102
    %v106 = vld [vmem:[%s1] sm:$0xff]
    %v107 = vld [vmem:[%s1 + $0x8] sm:$0xff]
    %v108 = vld [vmem:[%s1 + $0x10] sm:$0xff]
    %v109 = vld [vmem:[%s1 + $0x18] sm:$0xff]
    %v110 = vld [vmem:[%s1 + $0x20] sm:$0xff]
    %v111 = vld [vmem:[%s1 + $0x28] sm:$0xff]
    %v112 = vld [vmem:[%s1 + $0x30] sm:$0xff]
    %v113 = vld [vmem:[%s1 + $0x38] sm:$0xff]
    %v114 = vld [vmem:[%s1 + $0x40] sm:$0xff]
    %v115 = vld [vmem:[%s1 + $0x48] sm:$0xff]
    %v116 = vld [vmem:[%s1 + $0x50] sm:$0xff]
    %v117 = vld [vmem:[%s1 + $0x58] sm:$0xff]
    %v118 = vld [vmem:[%s1 + $0x60] sm:$0xff]
    %v119 = vld [vmem:[%s1 + $0x68] sm:$0xff]
    %v120 = vld [vmem:[%s1 + $0x70] sm:$0xff]
    %v121 = vld [vmem:[%s1 + $0x78] sm:$0xff]
    %v122 = vpack.c.bf16 %v107, %v106
    %v123 = vpack.c.bf16 %v109, %v108
    %v124 = vpack.c.bf16 %v111, %v110
    %v125 = vpack.c.bf16 %v113, %v112
    %v126 = vpack.c.bf16 %v115, %v114
    %v127 = vpack.c.bf16 %v117, %v116
    %v128 = vpack.c.bf16 %v119, %v118
    %v129 = vpack.c.bf16 %v121, %v120
    %v130 = vld [vmem:[%s2] sm:$0x1]
    %v132 = vlaneseq
    %v133 = vshrl.u32 %v132, 7
    %v134 = vsub.s32 0, %v133
    %v135 = vrot.slane %v130, %v134
    %137 = vmatprep.subr.bf16.mxu0 0
    %138 = vmatpush1.bf16.msra.mxu0 %v122
    %139 = vmatprep.subr.bf16.mxu0 0
    %140 = vmatpush1.bf16.msra.mxu0 %v123
    %141 = vmatprep.subr.bf16.mxu0 0
    %142 = vmatpush1.bf16.msra.mxu0 %v124
    %143 = vmatprep.subr.bf16.mxu0 0
    %144 = vmatpush1.bf16.msra.mxu0 %v125
    %145 = vmatprep.subr.bf16.mxu0 0
    %146 = vmatpush1.bf16.msra.mxu0 %v126
    %147 = vmatprep.subr.bf16.mxu0 0
    %148 = vmatpush1.bf16.msra.mxu0 %v127
    %149 = vmatprep.subr.bf16.mxu0 0
    %150 = vmatpush1.bf16.msra.mxu0 %v128
    %151 = vmatprep.subr.bf16.mxu0 0
    %152 = vmatpush1.bf16.msra.mxu0 %v129
    %153 = vmatprep.subr.bf16.mxu0 0
    %154 = vmatpush1.bf16.msra.mxu0 0
    %155 = vmatprep.subr.bf16.mxu0 0
    %156 = vmatpush1.bf16.msra.mxu0 0
    %157 = vmatprep.subr.bf16.mxu0 0
    %158 = vmatpush1.bf16.msra.mxu0 0
    %159 = vmatprep.subr.bf16.mxu0 0
    %160 = vmatpush1.bf16.msra.mxu0 0
    %161 = vmatprep.subr.bf16.mxu0 0
    %162 = vmatpush1.bf16.msra.mxu0 0
    %163 = vmatprep.subr.bf16.mxu0 0
    %164 = vmatpush1.bf16.msra.mxu0 0
    %165 = vmatprep.subr.bf16.mxu0 0
    %166 = vmatpush1.bf16.msra.mxu0 0
    %167 = vmatprep.subr.bf16.mxu0 0
    %168 = vmatpush1.bf16.msra.mxu0 0
    %169 = vmatprep.mubr.bf16.mxu0 0
    %170 = vmatmul.mubr.bf16.gmra.mrb[0].mxu0 %v104
    %v171 = vpop.f32.mrb[0].mxu0
    %v172 = vadd.f32 %v135, %v171
    %v173 = vpop.f32.mrb[0].mxu0
    %v174 = vpop.f32.mrb[0].mxu0
    %v175 = vadd.f32 %v135, %v174
    %v176 = vpop.f32.mrb[0].mxu0
    %177 = vmatprep.mubr.bf16.mxu0 0
    %178 = vmatmul.mubr.bf16.gmra.mrb[0].mxu0 %v105
    %v179 = vpop.f32.mrb[0].mxu0
    %v180 = vadd.f32 %v135, %v179
    %v181 = vpop.f32.mrb[0].mxu0
    %v182 = vpop.f32.mrb[0].mxu0
    %v183 = vadd.f32 %v135, %v182
    %v184 = vpop.f32.mrb[0].mxu0
    %185 = vdwg.mxu0
    %v186 = vmax.f32 %v172, 0.0
    %v187 = vmax.f32 %v175, 0.0
    %v188 = vmax.f32 %v180, 0.0
    %v189 = vmax.f32 %v183, 0.0
    %v190 = vpack.c.bf16 %v187, %v186
    %v191 = vpack.c.bf16 %v189, %v188
    %v192 = vld [vmem:[%s3] sm:$0xff]
    %v193 = vld [vmem:[%s3 + $0x8] sm:$0xff]
    %v194 = vld [vmem:[%s3 + $0x10] sm:$0xff]
    %v195 = vld [vmem:[%s3 + $0x18] sm:$0xff]
    %v196 = vld [vmem:[%s3 + $0x20] sm:$0xff]
    %v197 = vld [vmem:[%s3 + $0x28] sm:$0xff]
    %v198 = vld [vmem:[%s3 + $0x30] sm:$0xff]
    %v199 = vld [vmem:[%s3 + $0x38] sm:$0xff]
    %v200 = vld [vmem:[%s3 + $0x40] sm:$0xff]
    %v201 = vld [vmem:[%s3 + $0x48] sm:$0xff]
    %v202 = vld [vmem:[%s3 + $0x50] sm:$0xff]
    %v203 = vld [vmem:[%s3 + $0x58] sm:$0xff]
    %v204 = vld [vmem:[%s3 + $0x60] sm:$0xff]
    %v205 = vld [vmem:[%s3 + $0x68] sm:$0xff]
    %v206 = vld [vmem:[%s3 + $0x70] sm:$0xff]
    %v207 = vld [vmem:[%s3 + $0x78] sm:$0xff]
    %v208 = vpack.c.bf16 %v193, %v192
    %v209 = vpack.c.bf16 %v195, %v194
    %v210 = vpack.c.bf16 %v197, %v196
    %v211 = vpack.c.bf16 %v199, %v198
    %v212 = vpack.c.bf16 %v201, %v200
    %v213 = vpack.c.bf16 %v203, %v202
    %v214 = vpack.c.bf16 %v205, %v204
    %v215 = vpack.c.bf16 %v207, %v206
    %v216 = vld [vmem:[%s4] sm:$0x1]
    %v218 = vlaneseq
    %v219 = vshrl.u32 %v218, 7
    %v220 = vsub.s32 0, %v219
    %v221 = vrot.slane %v216, %v220
    %223 = vmatprep.subr.bf16.mxu0 0
    %224 = vmatpush1.bf16.msra.mxu0 %v208
    %225 = vmatprep.subr.bf16.mxu0 0
    %226 = vmatpush1.bf16.msra.mxu0 %v209
    %227 = vmatprep.subr.bf16.mxu0 0
    %228 = vmatpush1.bf16.msra.mxu0 %v210
    %229 = vmatprep.subr.bf16.mxu0 0
    %230 = vmatpush1.bf16.msra.mxu0 %v211
    %231 = vmatprep.subr.bf16.mxu0 0
    %232 = vmatpush1.bf16.msra.mxu0 %v212
    %233 = vmatprep.subr.bf16.mxu0 0
    %234 = vmatpush1.bf16.msra.mxu0 %v213
    %235 = vmatprep.subr.bf16.mxu0 0
    %236 = vmatpush1.bf16.msra.mxu0 %v214
    %237 = vmatprep.subr.bf16.mxu0 0
    %238 = vmatpush1.bf16.msra.mxu0 %v215
    %239 = vmatprep.subr.bf16.mxu0 0
    %240 = vmatpush1.bf16.msra.mxu0 0
    %241 = vmatprep.subr.bf16.mxu0 0
    %242 = vmatpush1.bf16.msra.mxu0 0
    %243 = vmatprep.subr.bf16.mxu0 0
    %244 = vmatpush1.bf16.msra.mxu0 0
    %245 = vmatprep.subr.bf16.mxu0 0
    %246 = vmatpush1.bf16.msra.mxu0 0
    %247 = vmatprep.subr.bf16.mxu0 0
    %248 = vmatpush1.bf16.msra.mxu0 0
    %249 = vmatprep.subr.bf16.mxu0 0
    %250 = vmatpush1.bf16.msra.mxu0 0
    %251 = vmatprep.subr.bf16.mxu0 0
    %252 = vmatpush1.bf16.msra.mxu0 0
    %253 = vmatprep.subr.bf16.mxu0 0
    %254 = vmatpush1.bf16.msra.mxu0 0
    %255 = vmatprep.mubr.bf16.mxu0 0
    %256 = vmatmul.mubr.bf16.gmra.mrb[0].mxu0 %v190
    %v257 = vpop.f32.mrb[0].mxu0
    %v258 = vadd.f32 %v221, %v257
    %v259 = vpop.f32.mrb[0].mxu0
    %v260 = vpop.f32.mrb[0].mxu0
    %v261 = vadd.f32 %v221, %v260
    %v262 = vpop.f32.mrb[0].mxu0
    %263 = vmatprep.mubr.bf16.mxu0 0
    %264 = vmatmul.mubr.bf16.gmra.mrb[0].mxu0 %v191
    %v265 = vpop.f32.mrb[0].mxu0
    %v266 = vadd.f32 %v221, %v265
    %v267 = vpop.f32.mrb[0].mxu0
    %v268 = vpop.f32.mrb[0].mxu0
    %v269 = vadd.f32 %v221, %v268
    %v270 = vpop.f32.mrb[0].mxu0
    %271 = vdwg.mxu0
    %v272 = vmax.f32 %v258, 0.0
    %v273 = vmax.f32 %v261, 0.0
    %v274 = vmax.f32 %v266, 0.0
    %v275 = vmax.f32 %v269, 0.0
    %v276 = vpack.c.bf16 %v273, %v272
    %v277 = vpack.c.bf16 %v275, %v274
    %v278 = vld [vmem:[%s5] sm:$0xff]
    %v279 = vld [vmem:[%s5 + $0x8] sm:$0xff]
    %v280 = vld [vmem:[%s5 + $0x10] sm:$0xff]
    %v281 = vld [vmem:[%s5 + $0x18] sm:$0xff]
    %v282 = vld [vmem:[%s5 + $0x20] sm:$0xff]
    %v283 = vld [vmem:[%s5 + $0x28] sm:$0xff]
    %v284 = vld [vmem:[%s5 + $0x30] sm:$0xff]
    %v285 = vld [vmem:[%s5 + $0x38] sm:$0xff]
    %v286 = vpack.c.bf16 %v279, %v278
    %v287 = vpack.c.bf16 %v281, %v280
    %v288 = vpack.c.bf16 %v283, %v282
    %v289 = vpack.c.bf16 %v285, %v284
    %v290 = vld [vmem:[#allocation5] sm:$0x1]
    %v292 = vlaneseq
    %v293 = vshrl.u32 %v292, 7
    %v294 = vsub.s32 0, %v293
    %v295 = vrot.slane %v290, %v294
    %vm297 = vcmask 523264
    %v299 = vsel %vm297, %v276, 0
    %v302 = vsel %vm297, %v277, 0
    %304 = vmatprep.subr.bf16.mxu0 0
    %305 = vmatpush1.bf16.msra.mxu0 %v286
    %306 = vmatprep.subr.bf16.mxu0 0
    %307 = vmatpush1.bf16.msra.mxu0 %v287
    %308 = vmatprep.subr.bf16.mxu0 0
    %309 = vmatpush1.bf16.msra.mxu0 %v288
    %310 = vmatprep.subr.bf16.mxu0 0
    %311 = vmatpush1.bf16.msra.mxu0 %v289
    %312 = vmatprep.subr.bf16.mxu0 0
    %313 = vmatpush1.bf16.msra.mxu0 0
    %314 = vmatprep.subr.bf16.mxu0 0
    %315 = vmatpush1.bf16.msra.mxu0 0
    %316 = vmatprep.subr.bf16.mxu0 0
    %317 = vmatpush1.bf16.msra.mxu0 0
    %318 = vmatprep.subr.bf16.mxu0 0
    %319 = vmatpush1.bf16.msra.mxu0 0
    %320 = vmatprep.subr.bf16.mxu0 0
    %321 = vmatpush1.bf16.msra.mxu0 0
    %322 = vmatprep.subr.bf16.mxu0 0
    %323 = vmatpush1.bf16.msra.mxu0 0
    %324 = vmatprep.subr.bf16.mxu0 0
    %325 = vmatpush1.bf16.msra.mxu0 0
    %326 = vmatprep.subr.bf16.mxu0 0
    %327 = vmatpush1.bf16.msra.mxu0 0
    %328 = vmatprep.subr.bf16.mxu0 0
    %329 = vmatpush1.bf16.msra.mxu0 0
    %330 = vmatprep.subr.bf16.mxu0 0
    %331 = vmatpush1.bf16.msra.mxu0 0
    %332 = vmatprep.subr.bf16.mxu0 0
    %333 = vmatpush1.bf16.msra.mxu0 0
    %334 = vmatprep.subr.bf16.mxu0 0
    %335 = vmatpush1.bf16.msra.mxu0 0
    %336 = vmatprep.mubr.bf16.mxu0 0
    %337 = vmatmul.mubr.bf16.gmra.mrb[0].mxu0 %v299
    %v338 = vpop.f32.mrb[0].mxu0
    %v339 = vadd.f32 %v295, %v338
    %v340 = vpop.f32.mrb[0].mxu0
    %v341 = vpop.f32.mrb[0].mxu0
    %v342 = vadd.f32 %v295, %v341
    %v343 = vpop.f32.mrb[0].mxu0
    %344 = vmatprep.mubr.bf16.mxu0 0
    %345 = vmatmul.mubr.bf16.gmra.mrb[0].mxu0 %v302
    %v346 = vpop.f32.mrb[0].mxu0
    %v347 = vadd.f32 %v295, %v346
    %v348 = vpop.f32.mrb[0].mxu0
    %v349 = vpop.f32.mrb[0].mxu0
    %v350 = vadd.f32 %v295, %v349
    %v351 = vpop.f32.mrb[0].mxu0
    %352 = vdwg.mxu0
    %vm353 = vcmask 261120
    %354 = vst.msk [vmem:[#allocation10] sm:$0xff] %vm353, %v339
    %355 = vst.msk [vmem:[#allocation10 + $0x8] sm:$0xff] %vm353, %v342
    %356 = vst.msk [vmem:[#allocation10 + $0x10] sm:$0xff] %vm353, %v347
    %357 = vst.msk [vmem:[#allocation10 + $0x18] sm:$0xff] %vm353, %v350
    %v358 = vpack.c.bf16 %v342, %v339
    %v359 = vpack.c.bf16 %v350, %v347
    %v360 = vld [vmem:[#allocation7] sm:$0xff]
    %v361 = vld [vmem:[#allocation7 + $0x8] sm:$0xff]
    %v362 = vld [vmem:[#allocation7 + $0x10] sm:$0xff]
    %v363 = vld [vmem:[#allocation7 + $0x18] sm:$0xff]
    %v364 = vpack.c.bf16 %v361, %v360
    %v365 = vpack.c.bf16 %v363, %v362
    %v366 = vld [vmem:[#allocation8] sm:$0x1]
    %v368 = vlaneseq
    %v369 = vshrl.u32 %v368, 7
    %v370 = vsub.s32 0, %v369
    %v371 = vrot.slane %v366, %v370
    %v374 = vsel %vm353, %v358, 0
    %v377 = vsel %vm353, %v359, 0
    %379 = vmatprep.subr.bf16.mxu0 0
    %380 = vmatpush1.bf16.msra.mxu0 %v364
    %381 = vmatprep.subr.bf16.mxu0 0
    %382 = vmatpush1.bf16.msra.mxu0 %v365
    %383 = vmatprep.subr.bf16.mxu0 0
    %384 = vmatpush1.bf16.msra.mxu0 0
    %385 = vmatprep.subr.bf16.mxu0 0
    %386 = vmatpush1.bf16.msra.mxu0 0
    %387 = vmatprep.subr.bf16.mxu0 0
    %388 = vmatpush1.bf16.msra.mxu0 0
    %389 = vmatprep.subr.bf16.mxu0 0
    %390 = vmatpush1.bf16.msra.mxu0 0
    %391 = vmatprep.subr.bf16.mxu0 0
    %392 = vmatpush1.bf16.msra.mxu0 0
    %393 = vmatprep.subr.bf16.mxu0 0
    %394 = vmatpush1.bf16.msra.mxu0 0
    %395 = vmatprep.subr.bf16.mxu0 0
    %396 = vmatpush1.bf16.msra.mxu0 0
    %397 = vmatprep.subr.bf16.mxu0 0
    %398 = vmatpush1.bf16.msra.mxu0 0
    %399 = vmatprep.subr.bf16.mxu0 0
    %400 = vmatpush1.bf16.msra.mxu0 0
    %401 = vmatprep.subr.bf16.mxu0 0
    %402 = vmatpush1.bf16.msra.mxu0 0
    %403 = vmatprep.subr.bf16.mxu0 0
    %404 = vmatpush1.bf16.msra.mxu0 0
    %405 = vmatprep.subr.bf16.mxu0 0
    %406 = vmatpush1.bf16.msra.mxu0 0
    %407 = vmatprep.subr.bf16.mxu0 0
    %408 = vmatpush1.bf16.msra.mxu0 0
    %409 = vmatprep.subr.bf16.mxu0 0
    %410 = vmatpush1.bf16.msra.mxu0 0
    %411 = vmatprep.mubr.bf16.mxu0 0
    %412 = vmatmul.mubr.bf16.gmra.mrb[0].mxu0 %v374
    %v413 = vpop.f32.mrb[0].mxu0
    %v414 = vadd.f32 %v371, %v413
    %v415 = vpop.f32.mrb[0].mxu0
    %v416 = vpop.f32.mrb[0].mxu0
    %v417 = vadd.f32 %v371, %v416
    %v418 = vpop.f32.mrb[0].mxu0
    %419 = vmatprep.mubr.bf16.mxu0 0
    %420 = vmatmul.mubr.bf16.gmra.mrb[0].mxu0 %v377
    %v421 = vpop.f32.mrb[0].mxu0
    %v422 = vadd.f32 %v371, %v421
    %v423 = vpop.f32.mrb[0].mxu0
    %v424 = vpop.f32.mrb[0].mxu0
    %v425 = vadd.f32 %v371, %v424
    %v426 = vpop.f32.mrb[0].mxu0
    %427 = vdwg.mxu0
    %v428 = vmax.f32 %v414, 0.0
    %v429 = vmax.f32 %v417, 0.0
    %v430 = vmax.f32 %v422, 0.0
    %v431 = vmax.f32 %v425, 0.0
    %v432 = vpack.c.bf16 %v429, %v428
    %v433 = vpack.c.bf16 %v431, %v430
    %v434 = vld [vmem:[%s9] sm:$0xff]
    %v435 = vld [vmem:[%s9 + $0x8] sm:$0xff]
    %v436 = vld [vmem:[%s9 + $0x10] sm:$0xff]
    %v437 = vld [vmem:[%s9 + $0x18] sm:$0xff]
    %v438 = vld [vmem:[%s9 + $0x20] sm:$0xff]
    %v439 = vld [vmem:[%s9 + $0x28] sm:$0xff]
    %v440 = vld [vmem:[%s9 + $0x30] sm:$0xff]
    %v441 = vld [vmem:[%s9 + $0x38] sm:$0xff]
    %v442 = vpack.c.bf16 %v435, %v434
    %v443 = vpack.c.bf16 %v437, %v436
    %v444 = vpack.c.bf16 %v439, %v438
    %v445 = vpack.c.bf16 %v441, %v440
    %v446 = vld [vmem:[%s10] sm:$0x1]
    %v448 = vlaneseq
    %v449 = vshrl.u32 %v448, 7
    %v450 = vsub.s32 0, %v449
    %v451 = vrot.slane %v446, %v450
    %v454 = vsel %vm297, %v432, 0
    %v457 = vsel %vm297, %v433, 0
    %459 = vmatprep.subr.bf16.mxu0 0
    %460 = vmatpush1.bf16.msra.mxu0 %v442
    %461 = vmatprep.subr.bf16.mxu0 0
    %462 = vmatpush1.bf16.msra.mxu0 %v443
    %463 = vmatprep.subr.bf16.mxu0 0
    %464 = vmatpush1.bf16.msra.mxu0 %v444
    %465 = vmatprep.subr.bf16.mxu0 0
    %466 = vmatpush1.bf16.msra.mxu0 %v445
    %467 = vmatprep.subr.bf16.mxu0 0
    %468 = vmatpush1.bf16.msra.mxu0 0
    %469 = vmatprep.subr.bf16.mxu0 0
    %470 = vmatpush1.bf16.msra.mxu0 0
    %471 = vmatprep.subr.bf16.mxu0 0
    %472 = vmatpush1.bf16.msra.mxu0 0
    %473 = vmatprep.subr.bf16.mxu0 0
    %474 = vmatpush1.bf16.msra.mxu0 0
    %475 = vmatprep.subr.bf16.mxu0 0
    %476 = vmatpush1.bf16.msra.mxu0 0
    %477 = vmatprep.subr.bf16.mxu0 0
    %478 = vmatpush1.bf16.msra.mxu0 0
    %479 = vmatprep.subr.bf16.mxu0 0
    %480 = vmatpush1.bf16.msra.mxu0 0
    %481 = vmatprep.subr.bf16.mxu0 0
    %482 = vmatpush1.bf16.msra.mxu0 0
    %483 = vmatprep.subr.bf16.mxu0 0
    %484 = vmatpush1.bf16.msra.mxu0 0
    %485 = vmatprep.subr.bf16.mxu0 0
    %486 = vmatpush1.bf16.msra.mxu0 0
    %487 = vmatprep.subr.bf16.mxu0 0
    %488 = vmatpush1.bf16.msra.mxu0 0
    %489 = vmatprep.subr.bf16.mxu0 0
    %490 = vmatpush1.bf16.msra.mxu0 0
    %491 = vmatprep.mubr.bf16.mxu0 0
    %492 = vmatmul.mubr.bf16.gmra.mrb[0].mxu0 %v454
    %v493 = vpop.f32.mrb[0].mxu0
    %v494 = vadd.f32 %v451, %v493
    %v495 = vpop.f32.mrb[0].mxu0
    %v496 = vpop.f32.mrb[0].mxu0
    %v497 = vadd.f32 %v451, %v496
    %v498 = vpop.f32.mrb[0].mxu0
    %499 = vmatprep.mubr.bf16.mxu0 0
    %500 = vmatmul.mubr.bf16.gmra.mrb[0].mxu0 %v457
    %v501 = vpop.f32.mrb[0].mxu0
    %v502 = vadd.f32 %v451, %v501
    %v503 = vpop.f32.mrb[0].mxu0
    %v504 = vpop.f32.mrb[0].mxu0
    %v505 = vadd.f32 %v451, %v504
    %v506 = vpop.f32.mrb[0].mxu0
    %507 = vdwg.mxu0
    %v508 = vmax.f32 %v494, 0.0
    %v509 = vmax.f32 %v497, 0.0
    %v510 = vmax.f32 %v502, 0.0
    %v511 = vmax.f32 %v505, 0.0
    %v512 = vpack.c.bf16 %v509, %v508
    %v513 = vpack.c.bf16 %v511, %v510
    %v514 = vld [vmem:[%s11] sm:$0xff]
    %v515 = vld [vmem:[%s11 + $0x8] sm:$0xff]
    %v516 = vld [vmem:[%s11 + $0x10] sm:$0xff]
    %v517 = vld [vmem:[%s11 + $0x18] sm:$0xff]
    %v518 = vld [vmem:[%s11 + $0x20] sm:$0xff]
    %v519 = vld [vmem:[%s11 + $0x28] sm:$0xff]
    %v520 = vld [vmem:[%s11 + $0x30] sm:$0xff]
    %v521 = vld [vmem:[%s11 + $0x38] sm:$0xff]
    %v522 = vld [vmem:[%s11 + $0x40] sm:$0xff]
    %v523 = vld [vmem:[%s11 + $0x48] sm:$0xff]
    %v524 = vld [vmem:[%s11 + $0x50] sm:$0xff]
    %v525 = vld [vmem:[%s11 + $0x58] sm:$0xff]
    %v526 = vld [vmem:[%s11 + $0x60] sm:$0xff]
    %v527 = vld [vmem:[%s11 + $0x68] sm:$0xff]
    %v528 = vld [vmem:[%s11 + $0x70] sm:$0xff]
    %v529 = vld [vmem:[%s11 + $0x78] sm:$0xff]
    %v530 = vpack.c.bf16 %v515, %v514
    %v531 = vpack.c.bf16 %v517, %v516
    %v532 = vpack.c.bf16 %v519, %v518
    %v533 = vpack.c.bf16 %v521, %v520
    %v534 = vpack.c.bf16 %v523, %v522
    %v535 = vpack.c.bf16 %v525, %v524
    %v536 = vpack.c.bf16 %v527, %v526
    %v537 = vpack.c.bf16 %v529, %v528
    %v538 = vld [vmem:[%s12] sm:$0x1]
    %v540 = vlaneseq
    %v541 = vshrl.u32 %v540, 7
    %v542 = vsub.s32 0, %v541
    %v543 = vrot.slane %v538, %v542
    %545 = vmatprep.subr.bf16.mxu0 0
    %546 = vmatpush1.bf16.msra.mxu0 %v530
    %547 = vmatprep.subr.bf16.mxu0 0
    %548 = vmatpush1.bf16.msra.mxu0 %v531
    %549 = vmatprep.subr.bf16.mxu0 0
    %550 = vmatpush1.bf16.msra.mxu0 %v532
    %551 = vmatprep.subr.bf16.mxu0 0
    %552 = vmatpush1.bf16.msra.mxu0 %v533
    %553 = vmatprep.subr.bf16.mxu0 0
    %554 = vmatpush1.bf16.msra.mxu0 %v534
    %555 = vmatprep.subr.bf16.mxu0 0
    %556 = vmatpush1.bf16.msra.mxu0 %v535
    %557 = vmatprep.subr.bf16.mxu0 0
    %558 = vmatpush1.bf16.msra.mxu0 %v536
    %559 = vmatprep.subr.bf16.mxu0 0
    %560 = vmatpush1.bf16.msra.mxu0 %v537
    %561 = vmatprep.subr.bf16.mxu0 0
    %562 = vmatpush1.bf16.msra.mxu0 0
    %563 = vmatprep.subr.bf16.mxu0 0
    %564 = vmatpush1.bf16.msra.mxu0 0
    %565 = vmatprep.subr.bf16.mxu0 0
    %566 = vmatpush1.bf16.msra.mxu0 0
    %567 = vmatprep.subr.bf16.mxu0 0
    %568 = vmatpush1.bf16.msra.mxu0 0
    %569 = vmatprep.subr.bf16.mxu0 0
    %570 = vmatpush1.bf16.msra.mxu0 0
    %571 = vmatprep.subr.bf16.mxu0 0
    %572 = vmatpush1.bf16.msra.mxu0 0
    %573 = vmatprep.subr.bf16.mxu0 0
    %574 = vmatpush1.bf16.msra.mxu0 0
    %575 = vmatprep.subr.bf16.mxu0 0
    %576 = vmatpush1.bf16.msra.mxu0 0
    %577 = vmatprep.mubr.bf16.mxu0 0
    %578 = vmatmul.mubr.bf16.gmra.mrb[0].mxu0 %v512
    %v579 = vpop.f32.mrb[0].mxu0
    %v580 = vadd.f32 %v543, %v579
    %v581 = vpop.f32.mrb[0].mxu0
    %v582 = vpop.f32.mrb[0].mxu0
    %v583 = vadd.f32 %v543, %v582
    %v584 = vpop.f32.mrb[0].mxu0
    %585 = vmatprep.mubr.bf16.mxu0 0
    %586 = vmatmul.mubr.bf16.gmra.mrb[0].mxu0 %v513
    %v587 = vpop.f32.mrb[0].mxu0
    %v588 = vadd.f32 %v543, %v587
    %v589 = vpop.f32.mrb[0].mxu0
    %v590 = vpop.f32.mrb[0].mxu0
    %v591 = vadd.f32 %v543, %v590
    %v592 = vpop.f32.mrb[0].mxu0
    %593 = vdwg.mxu0
    %v594 = vtanh.pop %v580
    %v595 = vtanh.pop %v583
    %v596 = vtanh.pop %v588
    %v597 = vtanh.pop %v591
    %598 = vst [vmem:[#allocation11] sm:$0xff] %v594
    %599 = vst [vmem:[#allocation11 + $0x8] sm:$0xff] %v595
    %600 = vst [vmem:[#allocation11 + $0x10] sm:$0xff] %v596
    %601 = vst [vmem:[#allocation11 + $0x18] sm:$0xff] %v597
    // Predicated region
    $region70: #{tpu_custom_call.1} parent=1 // pred_check
      _
    $region71: #{tpu_custom_call.1} parent=1 // pred_check_branch
      %603 = sbr.rel (0) target = $region73
    $region72: #{tpu_custom_call.1} parent=1 // pred_region
      %s605 = ssub.s32 512, 384
      %606 = vsyncadd [#allocation4], %s605
      %s607 = sshll.u32 [#allocation10], 4
      %s608 = int_to_ptr.vmem [resolvable:$true] %s607
      %613 = dma.vmem_to_hbm [thread:$0]  %s608, 384, %s13, [#allocation4], 128, 128, 8
    $region73: #{tpu_custom_call.1} parent=1 // pred_fallthru
      _
    // Predicated region
    $region74: #{tpu_custom_call.1} parent=1 // pred_check
      _
    $region75: #{tpu_custom_call.1} parent=1 // pred_check_branch
      %615 = sbr.rel (0) target = $region77
    $region76: #{tpu_custom_call.1} parent=1 // pred_region
      %s617 = ssub.s32 512, 384
      %618 = vsyncadd [#allocation12], %s617
      %s619 = sshll.u32 [#allocation11], 4
      %s620 = int_to_ptr.vmem [resolvable:$true] %s619
      %625 = dma.vmem_to_hbm [thread:$0]  %s620, 384, %s14, [#allocation12], 128, 128, 8
    $region77: #{tpu_custom_call.1} parent=1 // pred_fallthru
      _
    // Predicated region
    $region78: #{tpu_custom_call.1} parent=1 // pred_check
      _
    $region79: #{tpu_custom_call.1} parent=1 // pred_check_branch
      %627 = sbr.rel (0) target = $region81
    $region80: #{tpu_custom_call.1} parent=1 // pred_region
      %628 = dma.done [#allocation4], 512
    $region81: #{tpu_custom_call.1} parent=1 // pred_fallthru
      _
    // Predicated region
    $region82: #{tpu_custom_call.1} parent=1 // pred_check
      _
    $region83: #{tpu_custom_call.1} parent=1 // pred_check_branch
      %630 = sbr.rel (0) target = $region85
    $region84: #{tpu_custom_call.1} parent=1 // pred_region
      %631 = dma.done [#allocation12], 512
    $region85: #{tpu_custom_call.1} parent=1 // pred_fallthru
      _
    %632 = vsyncpa [#allocation3], 1
    %633 = vsyncpa [#allocation6], 1
    %634 = vsyncpa [#allocation9], 1
    %635 = vsyncpa [#allocation4], 1
    %636 = vsyncpa [#allocation12], 1

</llo_original>
